<compile_context>
chip_gen: v7x
topology: tpu7x:2x2x1
jax: 0.10.0
libtpu: 0.0.40
codegen_flags: <defaults>
</compile_context>

<pallas_src>
import math

import jax
import jax.numpy as jnp
from jax import lax
from jax.experimental import pallas as pl
from jax.experimental.pallas import tpu as pltpu

# ----------------------- problem sizes (small demo) -------------------------
H = 16                       # image height (stands in for config.output_size)
W = 16                       # image width
HW = H * W                   # 256 -> lane-dense (multiple of 128)
CIN = 3                      # RGB
CPROTO = 32                  # prototype mask channels
NANCH = 8                    # number of anchors / detections returned
ANCHOR_STRIDE = HW // NANCH  # fixed anchor grid positions (every 32nd pixel)
HEAD_OUT = 4 + 1 + CPROTO    # box(4) + conf(1) + mask coefficients(32) = 37
BOX_LANES = 128              # lane-dense box output slab width
CONF_THR = 0.55              # FastSAMConfig.confidence
CONF_LOGIT_THR = math.log(CONF_THR / (1.0 - CONF_THR))   # sigmoid(t)>.55 <=> t>thr


# ------------------------------ fused kernel --------------------------------
def fastsam_kernel(x_ref, xa_ref, wp_ref, bp_ref, wpT_ref, bpT_ref,
                   wh_ref, bh_ref, mask_ref, box_ref):
    """Whole FastSAM forward hot path in one kernel invocation.

    x_ref   : (CIN, HW)        image, channels on sublanes, pixels on lanes
    xa_ref  : (NANCH, CIN)     pre-gathered anchor pixels (transposed layout)
    wp_ref  : (CPROTO, CIN)    proto-net weights
    bp_ref  : (CPROTO, 1)      proto-net bias
    wpT_ref : (CIN, CPROTO)    same weights, transposed layout (for the head path)
    bpT_ref : (1, CPROTO)      same bias, transposed layout
    wh_ref  : (CPROTO, HEAD_OUT) detection-head weights
    bh_ref  : (1, HEAD_OUT)    detection-head bias
    mask_ref: (NANCH, HW) int8 out   box_ref: (NANCH, BOX_LANES) int32 out
    """
    # --- proto-net: 1x1 conv as matmul over channels + ReLU (lane-dense) ----
    protoT = jnp.dot(wp_ref[...], x_ref[...],
                     preferred_element_type=jnp.float32) + bp_ref[...]
    protoT = jnp.maximum(protoT, 0.0)                       # (CPROTO, HW)

    # --- anchor features: recompute protos for the 8 anchor pixels only -----
    # (column gather commutes with the per-column affine + ReLU -> exact)
    feats = jnp.dot(xa_ref[...], wpT_ref[...],
                    preferred_element_type=jnp.float32) + bpT_ref[...]
    feats = jnp.maximum(feats, 0.0)                          # (NANCH, CPROTO)

    # --- detection head: per-anchor matmul ----------------------------------
    h = jnp.dot(feats, wh_ref[...],
                preferred_element_type=jnp.float32) + bh_ref[...]  # (NANCH, 37)

    # confidence gate without sigmoid: compare logits against logit(0.55)
    keep = h[:, 4:5] > CONF_LOGIT_THR                        # (NANCH, 1) bool

    # --- box decode: xywh -> xyxy, clamp, int32 (all Python-scalar consts) --
    xywh = jax.nn.sigmoid(h[:, 0:4])                         # one EUP pass
    bx = xywh[:, 0:1] * float(W)
    by = xywh[:, 1:2] * float(H)
    bw = xywh[:, 2:3] * float(W)
    bhh = xywh[:, 3:4] * float(H)
    x1 = jnp.clip(bx - 0.5 * bw, 0.0, float(W))
    y1 = jnp.clip(by - 0.5 * bhh, 0.0, float(H))
    x2 = jnp.clip(bx + 0.5 * bw, 0.0, float(W))
    y2 = jnp.clip(by + 0.5 * bhh, 0.0, float(H))

    # lane-dense box slab: xyxy in lanes 0..3, zeros elsewhere (no vst.msk)
    lane = lax.broadcasted_iota(jnp.int32, (NANCH, BOX_LANES), 1)
    slab = jnp.where(lane == 0, x1,
           jnp.where(lane == 1, y1,
           jnp.where(lane == 2, x2,
           jnp.where(lane == 3, y2, 0.0))))
    box_ref[...] = jnp.where(keep, slab, 0.0).astype(jnp.int32)

    # --- mask assembly hot path: coeffs @ protoT, threshold at logit 0 ------
    coeffs = h[:, 5:HEAD_OUT]                                # (NANCH, CPROTO)
    logits = jnp.dot(coeffs, protoT,
                     preferred_element_type=jnp.float32)     # (NANCH, HW)
    m = jnp.logical_and(logits > 0.0, keep)                  # sigmoid(l)>0.5 <=> l>0
    mask_ref[...] = m.astype(jnp.int8)


# -------------------------------- wrapper ------------------------------------
def fastsam_forward(img, params):
    """img: (1, 3, H, W) float32 NCHW.  Returns (masks bool (N,H,W), boxes int32 (N,4))."""
    wp, bp, wpT, bpT, wh, bh = params

    # NCHW (B=1) -> (C, HW) is a free reshape; no channel padding needed.
    x = img.reshape(CIN, HW).astype(jnp.float32)
    # Pre-gather the 8 fixed-grid anchor pixels (24 floats) in transposed layout.
    x_anchor_t = x[:, ::ANCHOR_STRIDE].T                     # (NANCH, CIN)

    masks_i8, boxes_pad = pl.pallas_call(
        fastsam_kernel,
        out_shape=(
            jax.ShapeDtypeStruct((NANCH, HW), jnp.int8),
            jax.ShapeDtypeStruct((NANCH, BOX_LANES), jnp.int32),
        ),
        in_specs=[pl.BlockSpec(memory_space=pltpu.MemorySpace.VMEM)] * 8,
        out_specs=(
            pl.BlockSpec(memory_space=pltpu.MemorySpace.VMEM),
            pl.BlockSpec(memory_space=pltpu.MemorySpace.VMEM),
        ),
    )(x, x_anchor_t, wp, bp, wpT, bpT, wh, bh)

    masks = masks_i8.reshape(NANCH, H, W).astype(jnp.bool_)  # masks.data.to(bool)
    boxes = boxes_pad[:, :4]                                 # boxes.xyxy.to(int32)
    return masks, boxes


def init_params():
    key = jax.random.PRNGKey(0)
    k1, k2, k3, k4 = jax.random.split(key, 4)
    wp = jax.random.normal(k1, (CPROTO, CIN), jnp.float32) * 0.5
    bp = jax.random.normal(k2, (CPROTO, 1), jnp.float32) * 0.1
    wh = jax.random.normal(k3, (CPROTO, HEAD_OUT), jnp.float32) * 0.5
    bh = jax.random.normal(k4, (1, HEAD_OUT), jnp.float32) * 0.1
    # Both layouts prepared once, outside the timed forward (no in-kernel /
    # in-wrapper transposes of weights).
    return wp, bp, wp.T, bp.T, wh, bh


if __name__ == "__main__":
    key = jax.random.PRNGKey(0)
    img = jax.random.normal(key, (1, CIN, H, W), jnp.float32)   # NCHW, B=1
    params = init_params()

    masks, boxes = jax.jit(fastsam_forward)(img, params)
    jax.block_until_ready((masks, boxes))

    assert masks.shape == (NANCH, H, W) and masks.dtype == jnp.bool_
    assert boxes.shape == (NANCH, 4) and boxes.dtype == jnp.int32
    print("KERNEL_OK")
</pallas_src>

<mosaic_0001>
module attributes {stable_mosaic.version = 11 : i64} {
  func.func @fastsam_kernel(%arg0: memref<3x256xf32, #tpu.memory_space<vmem>>, %arg1: memref<8x3xf32, #tpu.memory_space<vmem>>, %arg2: memref<32x3xf32, #tpu.memory_space<vmem>>, %arg3: memref<32x1xf32, #tpu.memory_space<vmem>>, %arg4: memref<3x32xf32, #tpu.memory_space<vmem>>, %arg5: memref<1x32xf32, #tpu.memory_space<vmem>>, %arg6: memref<32x37xf32, #tpu.memory_space<vmem>>, %arg7: memref<1x37xf32, #tpu.memory_space<vmem>>, %arg8: memref<8x256xi8, #tpu.memory_space<vmem>>, %arg9: memref<8x128xi32, #tpu.memory_space<vmem>>) attributes {dimension_semantics = [], scalar_prefetch = 0 : i64, scratch_operands = 0 : i64, tpu.core_type = #tpu.core_type<tc>} {
    %c0 = arith.constant 0 : index
    %c0_0 = arith.constant 0 : index
    %0 = vector.load %arg2[%c0, %c0_0] : memref<32x3xf32, #tpu.memory_space<vmem>>, vector<32x3xf32>
    %c0_1 = arith.constant 0 : index
    %c0_2 = arith.constant 0 : index
    %1 = vector.load %arg0[%c0_1, %c0_2] : memref<3x256xf32, #tpu.memory_space<vmem>>, vector<3x256xf32>
    %cst = arith.constant dense<0.000000e+00> : vector<32x256xf32>
    %2 = tpu.matmul %0, %1, %cst {dimension_numbers = #tpu.dot_dimension_numbers<[1], [0], [0], [1], [0, 0, 1, 1], [], []>} : vector<32x3xf32>, vector<3x256xf32>, vector<32x256xf32> -> vector<32x256xf32>
    %c0_3 = arith.constant 0 : index
    %c0_4 = arith.constant 0 : index
    %3 = vector.load %arg3[%c0_3, %c0_4] : memref<32x1xf32, #tpu.memory_space<vmem>>, vector<32x1xf32>
    %4 = vector.broadcast %3 : vector<32x1xf32> to vector<32x256xf32>
    %5 = arith.addf %2, %4 : vector<32x256xf32>
    %cst_5 = arith.constant 0.000000e+00 : f32
    %6 = vector.broadcast %cst_5 : f32 to vector<32x256xf32>
    %7 = arith.maximumf %5, %6 : vector<32x256xf32>
    %c0_6 = arith.constant 0 : index
    %c0_7 = arith.constant 0 : index
    %8 = vector.load %arg1[%c0_6, %c0_7] : memref<8x3xf32, #tpu.memory_space<vmem>>, vector<8x3xf32>
    %c0_8 = arith.constant 0 : index
    %c0_9 = arith.constant 0 : index
    %9 = vector.load %arg4[%c0_8, %c0_9] : memref<3x32xf32, #tpu.memory_space<vmem>>, vector<3x32xf32>
    %cst_10 = arith.constant dense<0.000000e+00> : vector<8x32xf32>
    %10 = tpu.matmul %8, %9, %cst_10 {dimension_numbers = #tpu.dot_dimension_numbers<[1], [0], [0], [1], [0, 0, 1, 1], [], []>} : vector<8x3xf32>, vector<3x32xf32>, vector<8x32xf32> -> vector<8x32xf32>
    %c0_11 = arith.constant 0 : index
    %c0_12 = arith.constant 0 : index
    %11 = vector.load %arg5[%c0_11, %c0_12] : memref<1x32xf32, #tpu.memory_space<vmem>>, vector<1x32xf32>
    %12 = vector.broadcast %11 : vector<1x32xf32> to vector<8x32xf32>
    %13 = arith.addf %10, %12 : vector<8x32xf32>
    %cst_13 = arith.constant 0.000000e+00 : f32
    %14 = vector.broadcast %cst_13 : f32 to vector<8x32xf32>
    %15 = arith.maximumf %13, %14 : vector<8x32xf32>
    %c0_14 = arith.constant 0 : index
    %c0_15 = arith.constant 0 : index
    %16 = vector.load %arg6[%c0_14, %c0_15] : memref<32x37xf32, #tpu.memory_space<vmem>>, vector<32x37xf32>
    %cst_16 = arith.constant dense<0.000000e+00> : vector<8x37xf32>
    %17 = tpu.matmul %15, %16, %cst_16 {dimension_numbers = #tpu.dot_dimension_numbers<[1], [0], [0], [1], [0, 0, 1, 1], [], []>} : vector<8x32xf32>, vector<32x37xf32>, vector<8x37xf32> -> vector<8x37xf32>
    %c0_17 = arith.constant 0 : index
    %c0_18 = arith.constant 0 : index
    %18 = vector.load %arg7[%c0_17, %c0_18] : memref<1x37xf32, #tpu.memory_space<vmem>>, vector<1x37xf32>
    %19 = vector.broadcast %18 : vector<1x37xf32> to vector<8x37xf32>
    %20 = arith.addf %17, %19 : vector<8x37xf32>
    %21 = vector.extract_strided_slice %20 {offsets = [0, 4], sizes = [8, 1], strides = [1, 1]} : vector<8x37xf32> to vector<8x1xf32>
    %cst_19 = arith.constant 0.200670689 : f32
    %22 = vector.broadcast %cst_19 : f32 to vector<8x1xf32>
    %23 = arith.cmpf ogt, %21, %22 : vector<8x1xf32>
    %24 = vector.extract_strided_slice %20 {offsets = [0, 0], sizes = [8, 4], strides = [1, 1]} : vector<8x37xf32> to vector<8x4xf32>
    %25 = arith.negf %24 : vector<8x4xf32>
    %26 = math.exp %25 : vector<8x4xf32>
    %cst_20 = arith.constant 1.000000e+00 : f32
    %27 = vector.broadcast %cst_20 : f32 to vector<8x4xf32>
    %28 = arith.addf %27, %26 : vector<8x4xf32>
    %29 = arith.divf %27, %28 : vector<8x4xf32>
    %30 = vector.extract_strided_slice %29 {offsets = [0, 0], sizes = [8, 1], strides = [1, 1]} : vector<8x4xf32> to vector<8x1xf32>
    %cst_21 = arith.constant 1.600000e+01 : f32
    %31 = vector.broadcast %cst_21 : f32 to vector<8x1xf32>
    %32 = arith.mulf %30, %31 : vector<8x1xf32>
    %33 = vector.extract_strided_slice %29 {offsets = [0, 1], sizes = [8, 1], strides = [1, 1]} : vector<8x4xf32> to vector<8x1xf32>
    %cst_22 = arith.constant 1.600000e+01 : f32
    %34 = vector.broadcast %cst_22 : f32 to vector<8x1xf32>
    %35 = arith.mulf %33, %34 : vector<8x1xf32>
    %36 = vector.extract_strided_slice %29 {offsets = [0, 2], sizes = [8, 1], strides = [1, 1]} : vector<8x4xf32> to vector<8x1xf32>
    %cst_23 = arith.constant 1.600000e+01 : f32
    %37 = vector.broadcast %cst_23 : f32 to vector<8x1xf32>
    %38 = arith.mulf %36, %37 : vector<8x1xf32>
    %39 = vector.extract_strided_slice %29 {offsets = [0, 3], sizes = [8, 1], strides = [1, 1]} : vector<8x4xf32> to vector<8x1xf32>
    %cst_24 = arith.constant 1.600000e+01 : f32
    %40 = vector.broadcast %cst_24 : f32 to vector<8x1xf32>
    %41 = arith.mulf %39, %40 : vector<8x1xf32>
    %cst_25 = arith.constant 5.000000e-01 : f32
    %42 = vector.broadcast %cst_25 : f32 to vector<8x1xf32>
    %43 = arith.mulf %42, %38 : vector<8x1xf32>
    %44 = arith.subf %32, %43 : vector<8x1xf32>
    %cst_26 = arith.constant 0.000000e+00 : f32
    %cst_27 = arith.constant 1.600000e+01 : f32
    %45 = vector.broadcast %cst_26 : f32 to vector<8x1xf32>
    %46 = arith.maximumf %45, %44 : vector<8x1xf32>
    %47 = vector.broadcast %cst_27 : f32 to vector<8x1xf32>
    %48 = arith.minimumf %47, %46 : vector<8x1xf32>
    %cst_28 = arith.constant 5.000000e-01 : f32
    %49 = vector.broadcast %cst_28 : f32 to vector<8x1xf32>
    %50 = arith.mulf %49, %41 : vector<8x1xf32>
    %51 = arith.subf %35, %50 : vector<8x1xf32>
    %cst_29 = arith.constant 0.000000e+00 : f32
    %cst_30 = arith.constant 1.600000e+01 : f32
    %52 = vector.broadcast %cst_29 : f32 to vector<8x1xf32>
    %53 = arith.maximumf %52, %51 : vector<8x1xf32>
    %54 = vector.broadcast %cst_30 : f32 to vector<8x1xf32>
    %55 = arith.minimumf %54, %53 : vector<8x1xf32>
    %cst_31 = arith.constant 5.000000e-01 : f32
    %56 = vector.broadcast %cst_31 : f32 to vector<8x1xf32>
    %57 = arith.mulf %56, %38 : vector<8x1xf32>
    %58 = arith.addf %32, %57 : vector<8x1xf32>
    %cst_32 = arith.constant 0.000000e+00 : f32
    %cst_33 = arith.constant 1.600000e+01 : f32
    %59 = vector.broadcast %cst_32 : f32 to vector<8x1xf32>
    %60 = arith.maximumf %59, %58 : vector<8x1xf32>
    %61 = vector.broadcast %cst_33 : f32 to vector<8x1xf32>
    %62 = arith.minimumf %61, %60 : vector<8x1xf32>
    %cst_34 = arith.constant 5.000000e-01 : f32
    %63 = vector.broadcast %cst_34 : f32 to vector<8x1xf32>
    %64 = arith.mulf %63, %41 : vector<8x1xf32>
    %65 = arith.addf %35, %64 : vector<8x1xf32>
    %cst_35 = arith.constant 0.000000e+00 : f32
    %cst_36 = arith.constant 1.600000e+01 : f32
    %66 = vector.broadcast %cst_35 : f32 to vector<8x1xf32>
    %67 = arith.maximumf %66, %65 : vector<8x1xf32>
    %68 = vector.broadcast %cst_36 : f32 to vector<8x1xf32>
    %69 = arith.minimumf %68, %67 : vector<8x1xf32>
    %70 = tpu.iota {dimensions = array<i32: 1>} : vector<8x128xi32>
    %c0_i32 = arith.constant 0 : i32
    %71 = vector.broadcast %c0_i32 : i32 to vector<8x128xi32>
    %72 = arith.cmpi eq, %70, %71 : vector<8x128xi32>
    %c1_i32 = arith.constant 1 : i32
    %73 = vector.broadcast %c1_i32 : i32 to vector<8x128xi32>
    %74 = arith.cmpi eq, %70, %73 : vector<8x128xi32>
    %c2_i32 = arith.constant 2 : i32
    %75 = vector.broadcast %c2_i32 : i32 to vector<8x128xi32>
    %76 = arith.cmpi eq, %70, %75 : vector<8x128xi32>
    %c3_i32 = arith.constant 3 : i32
    %77 = vector.broadcast %c3_i32 : i32 to vector<8x128xi32>
    %78 = arith.cmpi eq, %70, %77 : vector<8x128xi32>
    %cst_37 = arith.constant 0.000000e+00 : f32
    %79 = vector.shape_cast %69 : vector<8x1xf32> to vector<8x1xf32>
    %80 = vector.broadcast %79 : vector<8x1xf32> to vector<8x128xf32>
    %81 = vector.broadcast %cst_37 : f32 to vector<8x128xf32>
    %82 = arith.select %78, %80, %81 : vector<8x128xi1>, vector<8x128xf32>
    %83 = vector.shape_cast %62 : vector<8x1xf32> to vector<8x1xf32>
    %84 = vector.broadcast %83 : vector<8x1xf32> to vector<8x128xf32>
    %85 = arith.select %76, %84, %82 : vector<8x128xi1>, vector<8x128xf32>
    %86 = vector.shape_cast %55 : vector<8x1xf32> to vector<8x1xf32>
    %87 = vector.broadcast %86 : vector<8x1xf32> to vector<8x128xf32>
    %88 = arith.select %74, %87, %85 : vector<8x128xi1>, vector<8x128xf32>
    %89 = vector.shape_cast %48 : vector<8x1xf32> to vector<8x1xf32>
    %90 = vector.broadcast %89 : vector<8x1xf32> to vector<8x128xf32>
    %91 = arith.select %72, %90, %88 : vector<8x128xi1>, vector<8x128xf32>
    %cst_38 = arith.constant 0.000000e+00 : f32
    %92 = vector.shape_cast %23 : vector<8x1xi1> to vector<8x1xi1>
    %93 = vector.broadcast %92 : vector<8x1xi1> to vector<8x128xi1>
    %94 = vector.broadcast %cst_38 : f32 to vector<8x128xf32>
    %95 = arith.select %93, %91, %94 : vector<8x128xi1>, vector<8x128xf32>
    %96 = arith.fptosi %95 : vector<8x128xf32> to vector<8x128xi32>
    %c0_39 = arith.constant 0 : index
    %c0_40 = arith.constant 0 : index
    %97 = vector.load %arg9[%c0_39, %c0_40] : memref<8x128xi32, #tpu.memory_space<vmem>>, vector<8x128xi32>
    tpu.vector_store %arg9[%c0_39, %c0_40], %96 {strides = array<i32>} : memref<8x128xi32, #tpu.memory_space<vmem>>, vector<8x128xi32>,
    %98 = vector.extract_strided_slice %20 {offsets = [0, 5], sizes = [8, 32], strides = [1, 1]} : vector<8x37xf32> to vector<8x32xf32>
    %cst_41 = arith.constant dense<0.000000e+00> : vector<8x256xf32>
    %99 = tpu.matmul %98, %7, %cst_41 {dimension_numbers = #tpu.dot_dimension_numbers<[1], [0], [0], [1], [0, 0, 1, 1], [], []>} : vector<8x32xf32>, vector<32x256xf32>, vector<8x256xf32> -> vector<8x256xf32>
    %cst_42 = arith.constant 0.000000e+00 : f32
    %100 = vector.broadcast %cst_42 : f32 to vector<8x256xf32>
    %101 = arith.cmpf ogt, %99, %100 : vector<8x256xf32>
    %102 = vector.broadcast %23 : vector<8x1xi1> to vector<8x256xi1>
    %103 = arith.andi %101, %102 : vector<8x256xi1>
    %104 = arith.extui %103 : vector<8x256xi1> to vector<8x256xi8>
    %c0_43 = arith.constant 0 : index
    %c0_44 = arith.constant 0 : index
    %105 = vector.load %arg8[%c0_43, %c0_44] : memref<8x256xi8, #tpu.memory_space<vmem>>, vector<8x256xi8>
    tpu.vector_store %arg8[%c0_43, %c0_44], %104 {strides = array<i32>} : memref<8x256xi8, #tpu.memory_space<vmem>>, vector<8x256xi8>,
    return
  }
}

</mosaic_0001>

<llo_original>
// kernel: fastsam_forward.1
$region0: #{fastsam_forward.1}
  #allocation0 [shape = 'u32[]', space=smem, size = 0x4, offset = 0x4, fixed_abs, tag = 'smem constant byte address 0x4 - core index']
  #allocation1 [shape = 'u32[144,128]{1,0:T(1,128)}', space=vmem, size = 0x12000, scoped, tag = 'internal scratch']
  %s0 = inlined_call_operand.vmem [shape: f32[3,256], index: 0, kind: input, shape index: {}]
  %s1 = inlined_call_operand.vmem [shape: f32[8,3], index: 1, kind: input, shape index: {}]
  %s2 = inlined_call_operand.vmem [shape: f32[32,3], index: 2, kind: input, shape index: {}]
  %s3 = inlined_call_operand.vmem [shape: f32[32,1], index: 3, kind: input, shape index: {}]
  %s4 = inlined_call_operand.vmem [shape: f32[3,32], index: 4, kind: input, shape index: {}]
  %s5 = inlined_call_operand.vmem [shape: f32[1,32], index: 5, kind: input, shape index: {}]
  %s6 = inlined_call_operand.vmem [shape: f32[32,37], index: 6, kind: input, shape index: {}]
  %s7 = inlined_call_operand.vmem [shape: f32[1,37], index: 7, kind: input, shape index: {}]
  %s8 = inlined_call_operand.vmem [shape: s8[8,256], index: 8, kind: output, shape index: {0}]
  %s9 = inlined_call_operand.vmem [shape: s32[8,128], index: 9, kind: output, shape index: {1}]
  %10 = xla_tuple %s8, %s9
  %s11 = sld [smem:[#allocation0]]
  $region50: #{fastsam_forward.1} parent=0
    _
  %s13 = ssub.s32 1, %s11
  %s14 = scalar_select 0, %s13, %s11
  // Predicated region
  $region2: #{fastsam_forward.1} parent=0 // pred_check
    _
  $region3: #{fastsam_forward.1} parent=0 // pred_check_branch
    %16 = sbr.rel (0) target = $region5
  $region4: #{fastsam_forward.1} parent=0 // pred_region
    _
  $region5: #{fastsam_forward.1} parent=0 // pred_fallthru
    _
  // Predicated region
  $region6: #{fastsam_forward.1} parent=0 // pred_check
    _
  $region7: #{fastsam_forward.1} parent=0 // pred_check_branch
    %18 = sbr.rel (0) target = $region9
  $region8: #{fastsam_forward.1} parent=0 // pred_region
    _
  $region9: #{fastsam_forward.1} parent=0 // pred_fallthru
    _
  // Predicated region
  $region10: #{fastsam_forward.1} parent=0 // pred_check
    _
  $region11: #{fastsam_forward.1} parent=0 // pred_check_branch
    %20 = sbr.rel (0) target = $region13
  $region12: #{fastsam_forward.1} parent=0 // pred_region
    _
  $region13: #{fastsam_forward.1} parent=0 // pred_fallthru
    _
  // Predicated region
  $region14: #{fastsam_forward.1} parent=0 // pred_check
    _
  $region15: #{fastsam_forward.1} parent=0 // pred_check_branch
    %22 = sbr.rel (0) target = $region17
  $region16: #{fastsam_forward.1} parent=0 // pred_region
    _
  $region17: #{fastsam_forward.1} parent=0 // pred_fallthru
    _
  // Predicated region
  $region18: #{fastsam_forward.1} parent=0 // pred_check
    _
  $region19: #{fastsam_forward.1} parent=0 // pred_check_branch
    %24 = sbr.rel (0) target = $region21
  $region20: #{fastsam_forward.1} parent=0 // pred_region
    _
  $region21: #{fastsam_forward.1} parent=0 // pred_fallthru
    _
  // Predicated region
  $region22: #{fastsam_forward.1} parent=0 // pred_check
    _
  $region23: #{fastsam_forward.1} parent=0 // pred_check_branch
    %26 = sbr.rel (0) target = $region25
  $region24: #{fastsam_forward.1} parent=0 // pred_region
    _
  $region25: #{fastsam_forward.1} parent=0 // pred_fallthru
    _
  // Predicated region
  $region26: #{fastsam_forward.1} parent=0 // pred_check
    _
  $region27: #{fastsam_forward.1} parent=0 // pred_check_branch
    %28 = sbr.rel (0) target = $region29
  $region28: #{fastsam_forward.1} parent=0 // pred_region
    _
  $region29: #{fastsam_forward.1} parent=0 // pred_fallthru
    _
  // Predicated region
  $region30: #{fastsam_forward.1} parent=0 // pred_check
    _
  $region31: #{fastsam_forward.1} parent=0 // pred_check_branch
    %30 = sbr.rel (0) target = $region33
  $region32: #{fastsam_forward.1} parent=0 // pred_region
    _
  $region33: #{fastsam_forward.1} parent=0 // pred_fallthru
    _
  %v33 = vld [vmem:[%s2] sm:$0xff]
  %v34 = vld [vmem:[%s2 + $0x8] sm:$0xff]
  %v35 = vld [vmem:[%s2 + $0x10] sm:$0xff]
  %v36 = vld [vmem:[%s2 + $0x18] sm:$0xff]
  %v37 = vld [vmem:[%s0] sm:$0x77]
  %v38 = vld [vmem:[%s3] sm:$0xff]
  %v39 = vld [vmem:[%s3 + $0x8] sm:$0xff]
  %v40 = vld [vmem:[%s3 + $0x10] sm:$0xff]
  %v41 = vld [vmem:[%s3 + $0x18] sm:$0xff]
  %43 = vset.pattern.permute.xlu0 0
  %44 = vperm.xlu0 %43, %v38
  %v45 = vpop.permute.xlu0 %44
  %48 = vset.pattern.permute.xlu0 0
  %49 = vperm.xlu0 %48, %v39
  %v50 = vpop.permute.xlu0 %49
  %53 = vset.pattern.permute.xlu0 0
  %54 = vperm.xlu0 %53, %v40
  %v55 = vpop.permute.xlu0 %54
  %58 = vset.pattern.permute.xlu0 0
  %59 = vperm.xlu0 %58, %v41
  %v60 = vpop.permute.xlu0 %59
  %v63 = vcombine.high %v37, %v37
  %vm64 = vcmask 23552
  %v66 = vsel %vm64, %v33, 0
  %v69 = vsel %vm64, %v34, 0
  %v72 = vsel %vm64, %v35, 0
  %v75 = vsel %vm64, %v36, 0
  %vm77 = vcmask 1042432
  %v78 = vsel %vm77, %v37, 0
  %v80 = vsel %vm77, %v63, 0
  %82 = vmatprep.subr.mxu0 %v80
  %83 = vmatpush1.msra.mxu0 %v78
  %84 = vmatprep.subr.mxu0 0.0
  %85 = vmatpush1.msra.mxu0 0.0
  %86 = vmatprep.subr.mxu0 0.0
  %87 = vmatpush1.msra.mxu0 0.0
  %88 = vmatprep.subr.mxu0 0.0
  %89 = vmatpush1.msra.mxu0 0.0
  %90 = vmatprep.subr.mxu0 0.0
  %91 = vmatpush1.msra.mxu0 0.0
  %92 = vmatprep.subr.mxu0 0.0
  %93 = vmatpush1.msra.mxu0 0.0
  %94 = vmatprep.subr.mxu0 0.0
  %95 = vmatpush1.msra.mxu0 0.0
  %96 = vmatprep.subr.mxu0 0.0
  %97 = vmatpush1.msra.mxu0 0.0
  %98 = vmatprep.subr.mxu0 0.0
  %99 = vmatpush1.msra.mxu0 0.0
  %100 = vmatprep.subr.mxu0 0.0
  %101 = vmatpush1.msra.mxu0 0.0
  %102 = vmatprep.subr.mxu0 0.0
  %103 = vmatpush1.msra.mxu0 0.0
  %104 = vmatprep.subr.mxu0 0.0
  %105 = vmatpush1.msra.mxu0 0.0
  %106 = vmatprep.subr.mxu0 0.0
  %107 = vmatpush1.msra.mxu0 0.0
  %108 = vmatprep.subr.mxu0 0.0
  %109 = vmatpush1.msra.mxu0 0.0
  %110 = vmatprep.subr.mxu0 0.0
  %111 = vmatpush1.msra.mxu0 0.0
  %112 = vmatprep.subr.mxu0 0.0
  %113 = vmatpush1.msra.mxu0 0.0
  %114 = vmatprep.subr.mxu0 0.0
  %115 = vmatpush1.msra.mxu0 0.0
  %116 = vmatprep.subr.mxu0 0.0
  %117 = vmatpush1.msra.mxu0 0.0
  %118 = vmatprep.subr.mxu0 0.0
  %119 = vmatpush1.msra.mxu0 0.0
  %120 = vmatprep.subr.mxu0 0.0
  %121 = vmatpush1.msra.mxu0 0.0
  %122 = vmatprep.subr.mxu0 0.0
  %123 = vmatpush1.msra.mxu0 0.0
  %124 = vmatprep.subr.mxu0 0.0
  %125 = vmatpush1.msra.mxu0 0.0
  %126 = vmatprep.subr.mxu0 0.0
  %127 = vmatpush1.msra.mxu0 0.0
  %128 = vmatprep.subr.mxu0 0.0
  %129 = vmatpush1.msra.mxu0 0.0
  %130 = vmatprep.subr.mxu0 0.0
  %131 = vmatpush1.msra.mxu0 0.0
  %132 = vmatprep.subr.mxu0 0.0
  %133 = vmatpush1.msra.mxu0 0.0
  %134 = vmatprep.subr.mxu0 0.0
  %135 = vmatpush1.msra.mxu0 0.0
  %136 = vmatprep.subr.mxu0 0.0
  %137 = vmatpush1.msra.mxu0 0.0
  %138 = vmatprep.subr.mxu0 0.0
  %139 = vmatpush1.msra.mxu0 0.0
  %140 = vmatprep.subr.mxu0 0.0
  %141 = vmatpush1.msra.mxu0 0.0
  %142 = vmatprep.subr.mxu0 0.0
  %143 = vmatpush1.msra.mxu0 0.0
  %144 = vmatprep.subr.mxu0 0.0
  %145 = vmatpush1.msra.mxu0 0.0
  %146 = vmatprep.mubr.f32.mxu0 0.0
  %147 = vmatmul.mubr.f32.gmra.mrb[0].mxu0 %v66
  %v148 = vpop.f32.mrb[0].mxu0
  %v149 = vadd.f32 %v45, %v148
  %v150 = vpop.f32.mrb[0].mxu0
  %v151 = vadd.f32 %v45, %v150
  %152 = vmatprep.mubr.f32.mxu0 0.0
  %153 = vmatmul.mubr.f32.gmra.mrb[0].mxu0 %v69
  %v154 = vpop.f32.mrb[0].mxu0
  %v155 = vadd.f32 %v50, %v154
  %v156 = vpop.f32.mrb[0].mxu0
  %v157 = vadd.f32 %v50, %v156
  %158 = vmatprep.mubr.f32.mxu0 0.0
  %159 = vmatmul.mubr.f32.gmra.mrb[0].mxu0 %v72
  %v160 = vpop.f32.mrb[0].mxu0
  %v161 = vadd.f32 %v55, %v160
  %v162 = vpop.f32.mrb[0].mxu0
  %v163 = vadd.f32 %v55, %v162
  %164 = vmatprep.mubr.f32.mxu0 0.0
  %165 = vmatmul.mubr.f32.gmra.mrb[0].mxu0 %v75
  %v166 = vpop.f32.mrb[0].mxu0
  %v167 = vadd.f32 %v60, %v166
  %v168 = vpop.f32.mrb[0].mxu0
  %v169 = vadd.f32 %v60, %v168
  %170 = vdwg.mxu0
  %v171 = vmax.f32 %v149, 0.0
  %v172 = vmax.f32 %v151, 0.0
  %v173 = vmax.f32 %v155, 0.0
  %v174 = vmax.f32 %v157, 0.0
  %v175 = vmax.f32 %v161, 0.0
  %v176 = vmax.f32 %v163, 0.0
  %v177 = vmax.f32 %v167, 0.0
  %v178 = vmax.f32 %v169, 0.0
  %v179 = vld [vmem:[%s1] sm:$0xff]
  %v180 = vld [vmem:[%s4] sm:$0x7]
  %v181 = vld [vmem:[%s5] sm:$0x1]
  %v183 = vlaneseq
  %v184 = vshrl.u32 %v183, 7
  %v185 = vsub.s32 0, %v184
  %v186 = vrot.slane %v181, %v185
  %v189 = vsel %vm64, %v179, 0
  %v192 = vsel %vm77, %v180, 0
  %194 = vmatprep.subr.mxu0 0.0
  %195 = vmatpush1.msra.mxu0 %v192
  %196 = vmatprep.subr.mxu0 0.0
  %197 = vmatpush1.msra.mxu0 0.0
  %198 = vmatprep.subr.mxu0 0.0
  %199 = vmatpush1.msra.mxu0 0.0
  %200 = vmatprep.subr.mxu0 0.0
  %201 = vmatpush1.msra.mxu0 0.0
  %202 = vmatprep.subr.mxu0 0.0
  %203 = vmatpush1.msra.mxu0 0.0
  %204 = vmatprep.subr.mxu0 0.0
  %205 = vmatpush1.msra.mxu0 0.0
  %206 = vmatprep.subr.mxu0 0.0
  %207 = vmatpush1.msra.mxu0 0.0
  %208 = vmatprep.subr.mxu0 0.0
  %209 = vmatpush1.msra.mxu0 0.0
  %210 = vmatprep.subr.mxu0 0.0
  %211 = vmatpush1.msra.mxu0 0.0
  %212 = vmatprep.subr.mxu0 0.0
  %213 = vmatpush1.msra.mxu0 0.0
  %214 = vmatprep.subr.mxu0 0.0
  %215 = vmatpush1.msra.mxu0 0.0
  %216 = vmatprep.subr.mxu0 0.0
  %217 = vmatpush1.msra.mxu0 0.0
  %218 = vmatprep.subr.mxu0 0.0
  %219 = vmatpush1.msra.mxu0 0.0
  %220 = vmatprep.subr.mxu0 0.0
  %221 = vmatpush1.msra.mxu0 0.0
  %222 = vmatprep.subr.mxu0 0.0
  %223 = vmatpush1.msra.mxu0 0.0
  %224 = vmatprep.subr.mxu0 0.0
  %225 = vmatpush1.msra.mxu0 0.0
  %226 = vmatprep.subr.mxu0 0.0
  %227 = vmatpush1.msra.mxu0 0.0
  %228 = vmatprep.subr.mxu0 0.0
  %229 = vmatpush1.msra.mxu0 0.0
  %230 = vmatprep.subr.mxu0 0.0
  %231 = vmatpush1.msra.mxu0 0.0
  %232 = vmatprep.subr.mxu0 0.0
  %233 = vmatpush1.msra.mxu0 0.0
  %234 = vmatprep.subr.mxu0 0.0
  %235 = vmatpush1.msra.mxu0 0.0
  %236 = vmatprep.subr.mxu0 0.0
  %237 = vmatpush1.msra.mxu0 0.0
  %238 = vmatprep.subr.mxu0 0.0
  %239 = vmatpush1.msra.mxu0 0.0
  %240 = vmatprep.subr.mxu0 0.0
  %241 = vmatpush1.msra.mxu0 0.0
  %242 = vmatprep.subr.mxu0 0.0
  %243 = vmatpush1.msra.mxu0 0.0
  %244 = vmatprep.subr.mxu0 0.0
  %245 = vmatpush1.msra.mxu0 0.0
  %246 = vmatprep.subr.mxu0 0.0
  %247 = vmatpush1.msra.mxu0 0.0
  %248 = vmatprep.subr.mxu0 0.0
  %249 = vmatpush1.msra.mxu0 0.0
  %250 = vmatprep.subr.mxu0 0.0
  %251 = vmatpush1.msra.mxu0 0.0
  %252 = vmatprep.subr.mxu0 0.0
  %253 = vmatpush1.msra.mxu0 0.0
  %254 = vmatprep.subr.mxu0 0.0
  %255 = vmatpush1.msra.mxu0 0.0
  %256 = vmatprep.subr.mxu0 0.0
  %257 = vmatpush1.msra.mxu0 0.0
  %258 = vmatprep.mubr.f32.mxu0 0.0
  %259 = vmatmul.mubr.f32.gmra.mrb[0].mxu0 %v189
  %v260 = vpop.f32.mrb[0].mxu0
  %v261 = vadd.f32 %v186, %v260
  %v262 = vpop.f32.mrb[0].mxu0
  %263 = vdwg.mxu0
  %v264 = vmax.f32 %v261, 0.0
  %v265 = vld [vmem:[%s6] sm:$0xff]
  %v266 = vld [vmem:[%s6 + $0x8] sm:$0xff]
  %v267 = vld [vmem:[%s6 + $0x10] sm:$0xff]
  %v268 = vld [vmem:[%s6 + $0x18] sm:$0xff]
  %v269 = vld [vmem:[%s7] sm:$0x1]
  %v271 = vlaneseq
  %v272 = vshrl.u32 %v271, 7
  %v273 = vsub.s32 0, %v272
  %v274 = vrot.slane %v269, %v273
  %vm276 = vcmask 261120
  %v278 = vsel %vm276, %v264, 0
  %280 = vmatprep.subr.mxu0 0.0
  %281 = vmatpush1.msra.mxu0 %v265
  %282 = vmatprep.subr.mxu0 0.0
  %283 = vmatpush1.msra.mxu0 %v266
  %284 = vmatprep.subr.mxu0 0.0
  %285 = vmatpush1.msra.mxu0 %v267
  %286 = vmatprep.subr.mxu0 0.0
  %287 = vmatpush1.msra.mxu0 %v268
  %288 = vmatprep.subr.mxu0 0.0
  %289 = vmatpush1.msra.mxu0 0.0
  %290 = vmatprep.subr.mxu0 0.0
  %291 = vmatpush1.msra.mxu0 0.0
  %292 = vmatprep.subr.mxu0 0.0
  %293 = vmatpush1.msra.mxu0 0.0
  %294 = vmatprep.subr.mxu0 0.0
  %295 = vmatpush1.msra.mxu0 0.0
  %296 = vmatprep.subr.mxu0 0.0
  %297 = vmatpush1.msra.mxu0 0.0
  %298 = vmatprep.subr.mxu0 0.0
  %299 = vmatpush1.msra.mxu0 0.0
  %300 = vmatprep.subr.mxu0 0.0
  %301 = vmatpush1.msra.mxu0 0.0
  %302 = vmatprep.subr.mxu0 0.0
  %303 = vmatpush1.msra.mxu0 0.0
  %304 = vmatprep.subr.mxu0 0.0
  %305 = vmatpush1.msra.mxu0 0.0
  %306 = vmatprep.subr.mxu0 0.0
  %307 = vmatpush1.msra.mxu0 0.0
  %308 = vmatprep.subr.mxu0 0.0
  %309 = vmatpush1.msra.mxu0 0.0
  %310 = vmatprep.subr.mxu0 0.0
  %311 = vmatpush1.msra.mxu0 0.0
  %312 = vmatprep.subr.mxu0 0.0
  %313 = vmatpush1.msra.mxu0 0.0
  %314 = vmatprep.subr.mxu0 0.0
  %315 = vmatpush1.msra.mxu0 0.0
  %316 = vmatprep.subr.mxu0 0.0
  %317 = vmatpush1.msra.mxu0 0.0
  %318 = vmatprep.subr.mxu0 0.0
  %319 = vmatpush1.msra.mxu0 0.0
  %320 = vmatprep.subr.mxu0 0.0
  %321 = vmatpush1.msra.mxu0 0.0
  %322 = vmatprep.subr.mxu0 0.0
  %323 = vmatpush1.msra.mxu0 0.0
  %324 = vmatprep.subr.mxu0 0.0
  %325 = vmatpush1.msra.mxu0 0.0
  %326 = vmatprep.subr.mxu0 0.0
  %327 = vmatpush1.msra.mxu0 0.0
  %328 = vmatprep.subr.mxu0 0.0
  %329 = vmatpush1.msra.mxu0 0.0
  %330 = vmatprep.subr.mxu0 0.0
  %331 = vmatpush1.msra.mxu0 0.0
  %332 = vmatprep.subr.mxu0 0.0
  %333 = vmatpush1.msra.mxu0 0.0
  %334 = vmatprep.subr.mxu0 0.0
  %335 = vmatpush1.msra.mxu0 0.0
  %336 = vmatprep.subr.mxu0 0.0
  %337 = vmatpush1.msra.mxu0 0.0
  %338 = vmatprep.subr.mxu0 0.0
  %339 = vmatpush1.msra.mxu0 0.0
  %340 = vmatprep.subr.mxu0 0.0
  %341 = vmatpush1.msra.mxu0 0.0
  %342 = vmatprep.subr.mxu0 0.0
  %343 = vmatpush1.msra.mxu0 0.0
  %344 = vmatprep.mubr.f32.mxu0 0.0
  %345 = vmatmul.mubr.f32.gmra.mrb[0].mxu0 %v278
  %v346 = vpop.f32.mrb[0].mxu0
  %v347 = vadd.f32 %v274, %v346
  %v348 = vpop.f32.mrb[0].mxu0
  %349 = vdwg.mxu0
  %vm350 = vcmp.gt.f32.partialorder %v347, 0.20067069
  %v351 = vxor.u32 %v347, 2147483648
  %v352 = vmul.f32 %v351, 1.442695
  %v353 = vpow.pop %v352
  %v354 = vadd.f32 %v353, 1.0
  %v355 = vrcp.pop %v354
  %v356 = vmul.f32 1.0, %v355
  %v357 = vmul.f32 %v356, 16.0
  %v358 = vmul.f32 %v357, 0.5
  %360 = vrot.lane.b32.xlu0 %v358, 126
  %v361 = vpop.permute.xlu0 %360
  %v363 = vsub.f32 %v357, %v361
  %v364 = vmax.f32 %v363, 0.0
  %v365 = vmin.f32 %v364, 16.0
  %v366 = vadd.f32 %v357, %v361
  %v367 = vmax.f32 %v366, 0.0
  %v368 = vmin.f32 %v367, 16.0
  %v369 = vlaneseq
  %v370 = vand.u32 %v369, 127
  %vm371 = vcmp.eq.s32.totalorder %v370, 0
  %vm372 = vcmp.eq.s32.totalorder %v370, 1
  %vm373 = vcmp.eq.s32.totalorder %v370, 2
  %vm374 = vcmp.eq.s32.totalorder %v370, 3
  %376 = vset.pattern.permute.xlu0 1
  %377 = vperm.xlu0 %376, %v368
  %v378 = vpop.permute.xlu0 %377
  %v380 = vsel %vm374, %v378, 0.0
  %381 = vset.pattern.permute.xlu0 0
  %382 = vperm.xlu0 %381, %v368
  %v383 = vpop.permute.xlu0 %382
  %v385 = vsel %vm373, %v383, %v380
  %387 = vset.pattern.permute.xlu0 1
  %388 = vperm.xlu0 %387, %v365
  %v389 = vpop.permute.xlu0 %388
  %v391 = vsel %vm372, %v389, %v385
  %392 = vset.pattern.permute.xlu0 0
  %393 = vperm.xlu0 %392, %v365
  %v394 = vpop.permute.xlu0 %393
  %v396 = vsel %vm371, %v394, %v391
  %v397 = vsel %vm350, 1, 0
  %398 = vset.pattern.permute.xlu0 4
  %399 = vperm.xlu0 %398, %v397
  %v400 = vpop.permute.xlu0 %399
  %vm401 = vcmp.eq.s32.totalorder %v400, 1
  %v402 = vsel %vm401, %v396, 0.0
  %v403 = vcvt.f32.s32.to.zero.pseudo %v402
  %404 = vst [vmem:[%s9] sm:$0xff] %v403
  %406 = vrot.lane.b32.xlu0 %v347, 123
  %v407 = vpop.permute.xlu0 %406
  %v408 = vsel %vm276, %v407, 0
  %410 = vmatprep.subr.mxu0 %v172
  %411 = vmatpush1.msra.mxu0 %v171
  %412 = vmatprep.subr.mxu0 %v174
  %413 = vmatpush1.msra.mxu0 %v173
  %414 = vmatprep.subr.mxu0 %v176
  %415 = vmatpush1.msra.mxu0 %v175
  %416 = vmatprep.subr.mxu0 %v178
  %417 = vmatpush1.msra.mxu0 %v177
  %418 = vmatprep.subr.mxu0 0.0
  %419 = vmatpush1.msra.mxu0 0.0
  %420 = vmatprep.subr.mxu0 0.0
  %421 = vmatpush1.msra.mxu0 0.0
  %422 = vmatprep.subr.mxu0 0.0
  %423 = vmatpush1.msra.mxu0 0.0
  %424 = vmatprep.subr.mxu0 0.0
  %425 = vmatpush1.msra.mxu0 0.0
  %426 = vmatprep.subr.mxu0 0.0
  %427 = vmatpush1.msra.mxu0 0.0
  %428 = vmatprep.subr.mxu0 0.0
  %429 = vmatpush1.msra.mxu0 0.0
  %430 = vmatprep.subr.mxu0 0.0
  %431 = vmatpush1.msra.mxu0 0.0
  %432 = vmatprep.subr.mxu0 0.0
  %433 = vmatpush1.msra.mxu0 0.0
  %434 = vmatprep.subr.mxu0 0.0
  %435 = vmatpush1.msra.mxu0 0.0
  %436 = vmatprep.subr.mxu0 0.0
  %437 = vmatpush1.msra.mxu0 0.0
  %438 = vmatprep.subr.mxu0 0.0
  %439 = vmatpush1.msra.mxu0 0.0
  %440 = vmatprep.subr.mxu0 0.0
  %441 = vmatpush1.msra.mxu0 0.0
  %442 = vmatprep.subr.mxu0 0.0
  %443 = vmatpush1.msra.mxu0 0.0
  %444 = vmatprep.subr.mxu0 0.0
  %445 = vmatpush1.msra.mxu0 0.0
  %446 = vmatprep.subr.mxu0 0.0
  %447 = vmatpush1.msra.mxu0 0.0
  %448 = vmatprep.subr.mxu0 0.0
  %449 = vmatpush1.msra.mxu0 0.0
  %450 = vmatprep.subr.mxu0 0.0
  %451 = vmatpush1.msra.mxu0 0.0
  %452 = vmatprep.subr.mxu0 0.0
  %453 = vmatpush1.msra.mxu0 0.0
  %454 = vmatprep.subr.mxu0 0.0
  %455 = vmatpush1.msra.mxu0 0.0
  %456 = vmatprep.subr.mxu0 0.0
  %457 = vmatpush1.msra.mxu0 0.0
  %458 = vmatprep.subr.mxu0 0.0
  %459 = vmatpush1.msra.mxu0 0.0
  %460 = vmatprep.subr.mxu0 0.0
  %461 = vmatpush1.msra.mxu0 0.0
  %462 = vmatprep.subr.mxu0 0.0
  %463 = vmatpush1.msra.mxu0 0.0
  %464 = vmatprep.subr.mxu0 0.0
  %465 = vmatpush1.msra.mxu0 0.0
  %466 = vmatprep.subr.mxu0 0.0
  %467 = vmatpush1.msra.mxu0 0.0
  %468 = vmatprep.subr.mxu0 0.0
  %469 = vmatpush1.msra.mxu0 0.0
  %470 = vmatprep.subr.mxu0 0.0
  %471 = vmatpush1.msra.mxu0 0.0
  %472 = vmatprep.subr.mxu0 0.0
  %473 = vmatpush1.msra.mxu0 0.0
  %474 = vmatprep.mubr.f32.mxu0 0.0
  %475 = vmatmul.mubr.f32.gmra.mrb[0].mxu0 %v408
  %v476 = vpop.f32.mrb[0].mxu0
  %v477 = vadd.f32 0.0, %v476
  %v478 = vpop.f32.mrb[0].mxu0
  %v479 = vadd.f32 0.0, %v478
  %480 = vdwg.mxu0
  %vm481 = vcmp.gt.f32.partialorder %v477, 0.0
  %vm482 = vcmp.gt.f32.partialorder %v479, 0.0
  %vm483 = vmand %vm481, %vm401
  %vm484 = vmand %vm482, %vm401
  %vm485 = vmpackc.low %vm483, %vm483
  %vm486 = vmpackc.even %vm485, %vm485
  %vm487 = vmpackc.low %vm484, %vm484
  %vm488 = vmpackc.even %vm487, %vm487
  %v489 = vsel %vm486, 16843009, 0
  %v490 = vsel %vm488, 16843009, 0
  %v491 = vunpack.c.0.s8 %v489
  %v492 = vunpack.c.0.s8 %v490
  %v493 = vpack.c.b16 %v492, %v491
  %v494 = vpack.c.b8 %v493, %v493
  %495 = vst [vmem:[%s8] sm:$0xf] %v494
  // Predicated region
  $region34: #{fastsam_forward.1} parent=0 // pred_check
    _
  $region35: #{fastsam_forward.1} parent=0 // pred_check_branch
    %497 = sbr.rel (0) target = $region37
  $region36: #{fastsam_forward.1} parent=0 // pred_region
    _
  $region37: #{fastsam_forward.1} parent=0 // pred_fallthru
    _
  // Predicated region
  $region38: #{fastsam_forward.1} parent=0 // pred_check
    _
  $region39: #{fastsam_forward.1} parent=0 // pred_check_branch
    %499 = sbr.rel (0) target = $region41
  $region40: #{fastsam_forward.1} parent=0 // pred_region
    _
  $region41: #{fastsam_forward.1} parent=0 // pred_fallthru
    _
  // Predicated region
  $region42: #{fastsam_forward.1} parent=0 // pred_check
    _
  $region43: #{fastsam_forward.1} parent=0 // pred_check_branch
    %501 = sbr.rel (0) target = $region45
  $region44: #{fastsam_forward.1} parent=0 // pred_region
    _
  $region45: #{fastsam_forward.1} parent=0 // pred_fallthru
    _
  // Predicated region
  $region46: #{fastsam_forward.1} parent=0 // pred_check
    _
  $region47: #{fastsam_forward.1} parent=0 // pred_check_branch
    %503 = sbr.rel (0) target = $region49
  $region48: #{fastsam_forward.1} parent=0 // pred_region
    _
  $region49: #{fastsam_forward.1} parent=0 // pred_fallthru
    _

</llo_original>
